<compile_context>
chip_gen: v5e
topology: v5e:2x2
jax: 0.10.0
libtpu: 0.0.40
codegen_flags: <defaults>
</compile_context>

<pallas_src>
import functools

import jax
import jax.numpy as jnp
from jax import lax
from jax.experimental import pallas as pl
from jax.experimental.pallas import tpu as pltpu

LN_EPS = 1e-5  # torch nn.LayerNorm default


def _layernorm(x, gamma, beta):
    mu = jnp.mean(x, axis=-1, keepdims=True)
    var = jnp.mean((x - mu) ** 2, axis=-1, keepdims=True)
    return (x - mu) * lax.rsqrt(var + LN_EPS) * gamma + beta


def _pick_row_tile(n_rows, target=512):
    """Largest multiple-of-8 row tile <= target that divides n_rows (else full)."""
    if n_rows <= target:
        return n_rows
    t = target
    while t >= 8:
        if n_rows % t == 0:
            return t
        t -= 8
    return n_rows


def _vmem_limit(block_bytes):
    """Scoped-VMEM request: 2x (double buffering) + headroom, clamped to a safe range."""
    need = 2 * int(block_bytes) + (4 << 20)
    return int(max(min(need, 48 << 20), 16 << 20))


# --------------------------------------------------------------------------
# Fused resblock stack kernel.
# Grid = (row_tiles, n_resblocks); the activation tile stays resident in the
# output block across the layer axis (standard accumulator/carry pattern).
# Each layer: 2 x (LayerNorm -> ReLU -> Linear) + shortcut.
# --------------------------------------------------------------------------
def resblock_stack_kernel(x_ref, g1_ref, b1_ref, w1_ref, c1_ref,
                          g2_ref, b2_ref, w2_ref, c2_ref, o_ref):
    @pl.when(pl.program_id(1) == 0)
    def _():
        o_ref[...] = x_ref[...]                  # load activation once per row tile

    x = o_ref[...]                               # (TILE_N, D) carried across layers
    h = _layernorm(x, g1_ref[0], b1_ref[0])
    h = jnp.maximum(h, 0.0)
    h = jnp.dot(h, w1_ref[0], preferred_element_type=jnp.float32) + c1_ref[0]
    h = _layernorm(h, g2_ref[0], b2_ref[0])
    h = jnp.maximum(h, 0.0)
    h = jnp.dot(h, w2_ref[0], preferred_element_type=jnp.float32) + c2_ref[0]
    o_ref[...] = x + h


def resblock_stack_apply(x2d, sp, *, row_tile_target=512):
    N, D = x2d.shape
    L = sp["w1"].shape[0]
    tn = _pick_row_tile(N, row_tile_target)
    grid = (N // tn, L)

    mat = pl.BlockSpec((tn, D), lambda i, l: (i, 0))
    wsp = pl.BlockSpec((1, D, D), lambda i, l: (l, 0, 0))
    vsp = pl.BlockSpec((1, 1, D), lambda i, l: (l, 0, 0))

    block_bytes = 4 * (2 * tn * D + 2 * D * D + 6 * D)
    return pl.pallas_call(
        resblock_stack_kernel,
        out_shape=jax.ShapeDtypeStruct((N, D), jnp.float32),
        grid=grid,
        in_specs=[mat, vsp, vsp, wsp, vsp, vsp, vsp, wsp, vsp],
        out_specs=mat,
        compiler_params=pltpu.CompilerParams(
            dimension_semantics=("parallel", "arbitrary"),
            vmem_limit_bytes=_vmem_limit(block_bytes)),
    )(x2d, sp["g1"], sp["b1"], sp["w1"], sp["c1"],
      sp["g2"], sp["b2"], sp["w2"], sp["c2"])


# --------------------------------------------------------------------------
# Fused transformer-layer stack kernel.
# Grid = (batch, n_layers); one full (S, D) sequence stays resident in VMEM
# across all layers.  Per layer: LN -> ReLU -> fused-QKV MHA(key_padding_mask)
# -> query-row zeroing -> residual add.
# --------------------------------------------------------------------------
def tlayer_stack_kernel(x_ref, mk_ref, mq_ref, g_ref, b_ref,
                        wqkv_ref, cqkv_ref, wo_ref, co_ref,
                        o_ref, attn_ref, *, num_heads):
    @pl.when(pl.program_id(1) == 0)
    def _():
        o_ref[...] = x_ref[...]                  # load the sequence once per batch item

    x = o_ref[0]                                 # (S, D) carried across layers
    mask_k = mk_ref[0]                           # (1, S)  1.0 == padded key
    mask_q = mq_ref[0]                           # (S, 1)  1.0 == padded query
    S, D = x.shape
    hd = D // num_heads

    h = _layernorm(x, g_ref[0], b_ref[0])
    h = jnp.maximum(h, 0.0)

    # Single fused QKV projection; 1/sqrt(hd) is already folded into the Q part.
    qkv = jnp.dot(h, wqkv_ref[0], preferred_element_type=jnp.float32) + cqkv_ref[0]

    key_bias = mask_k * (-1e30)                  # (1, S) broadcast over queries

    # TODO(synk): for long sequences on v7x (64 MiB VMEM), tile attention over
    # KV blocks with an online-softmax accumulator instead of the full (S, S)
    # score matrix per head.
    for hh in range(num_heads):                  # static unroll over heads
        qs = qkv[:, hh * hd:(hh + 1) * hd]
        ks = qkv[:, D + hh * hd:D + (hh + 1) * hd]
        vs = qkv[:, 2 * D + hh * hd:2 * D + (hh + 1) * hd]
        # q @ k^T without materializing the transpose: contract the hd axis.
        scores = lax.dot_general(qs, ks, (((1,), (1,)), ((), ())),
                                 preferred_element_type=jnp.float32) + key_bias
        scores = scores - jnp.max(scores, axis=-1, keepdims=True)
        pr = jnp.exp(scores)
        pr = pr * pl.reciprocal(jnp.sum(pr, axis=-1, keepdims=True), approx=True)
        # Write each head's output at its lane offset (no concatenate).
        attn_ref[:, hh * hd:(hh + 1) * hd] = jnp.dot(
            pr, vs, preferred_element_type=jnp.float32)

    out = jnp.dot(attn_ref[...], wo_ref[0],
                  preferred_element_type=jnp.float32) + co_ref[0]
    out = out * (1.0 - mask_q)                   # torch.where(~mask, x1, 0)
    o_ref[0] = x + out


def tlayer_stack_apply(x, mask_k, mask_q, sp, num_heads):
    B, S, D = x.shape
    L = sp["wo"].shape[0]
    kernel = functools.partial(tlayer_stack_kernel, num_heads=num_heads)

    xspec = pl.BlockSpec((1, S, D), lambda b, l: (b, 0, 0))
    block_bytes = 4 * (3 * S * D + 2 * S + 4 * D * D + 6 * D)
    return pl.pallas_call(
        kernel,
        out_shape=jax.ShapeDtypeStruct((B, S, D), jnp.float32),
        grid=(B, L),
        in_specs=[xspec,
                  pl.BlockSpec((1, 1, S), lambda b, l: (b, 0, 0)),
                  pl.BlockSpec((1, S, 1), lambda b, l: (b, 0, 0)),
                  pl.BlockSpec((1, 1, D), lambda b, l: (l, 0, 0)),
                  pl.BlockSpec((1, 1, D), lambda b, l: (l, 0, 0)),
                  pl.BlockSpec((1, D, 3 * D), lambda b, l: (l, 0, 0)),
                  pl.BlockSpec((1, 1, 3 * D), lambda b, l: (l, 0, 0)),
                  pl.BlockSpec((1, D, D), lambda b, l: (l, 0, 0)),
                  pl.BlockSpec((1, 1, D), lambda b, l: (l, 0, 0))],
        out_specs=xspec,
        scratch_shapes=[pltpu.VMEM((S, D), jnp.float32)],
        compiler_params=pltpu.CompilerParams(
            dimension_semantics=("parallel", "arbitrary"),
            vmem_limit_bytes=_vmem_limit(block_bytes)),
    )(x, mask_k, mask_q, sp["g"], sp["b"],
      sp["wqkv"], sp["cqkv"], sp["wo"], sp["co"])


# --------------------------------------------------------------------------
# Parameter construction (deterministic, synthetic) + stacking for the fused calls
# --------------------------------------------------------------------------
def _linear(key, din, dout):
    k1, k2 = jax.random.split(key)
    bound = 1.0 / (din ** 0.5)
    w = jax.random.uniform(k1, (din, dout), jnp.float32, -bound, bound)
    b = jax.random.uniform(k2, (1, dout), jnp.float32, -bound, bound)
    return w, b


def _resblock_params(key, D):
    k1, k2 = jax.random.split(key)
    w1, c1 = _linear(k1, D, D)
    w2, c2 = _linear(k2, D, D)
    ones = jnp.ones((1, D), jnp.float32)
    zeros = jnp.zeros((1, D), jnp.float32)
    return dict(g1=ones, b1=zeros, w1=w1, c1=c1,
                g2=ones, b2=zeros, w2=w2, c2=c2)


def _tlayer_params(key, D):
    kq, kk, kv, ko = jax.random.split(key, 4)
    wq, cq = _linear(kq, D, D)
    wk, ck = _linear(kk, D, D)
    wv, cv = _linear(kv, D, D)
    wo, co = _linear(ko, D, D)
    return dict(g=jnp.ones((1, D), jnp.float32), b=jnp.zeros((1, D), jnp.float32),
                wq=wq, cq=cq, wk=wk, ck=ck, wv=wv, cv=cv, wo=wo, co=co)


def init_params(key, D, n_before, n_layers, n_after):
    keys = jax.random.split(key, max(n_before + n_layers + n_after, 1))
    i = 0
    params = {"before": [], "layers": [], "after": []}
    for _ in range(n_before):
        params["before"].append(_resblock_params(keys[i], D)); i += 1
    for _ in range(n_layers):
        params["layers"].append(_tlayer_params(keys[i], D)); i += 1
    for _ in range(n_after):
        params["after"].append(_resblock_params(keys[i], D)); i += 1
    return params


def _stack_resblocks(blocks):
    return {k: jnp.stack([blk[k] for blk in blocks], axis=0) for k in blocks[0]}


def _stack_tlayers(layers, num_heads, D):
    hd = D // num_heads
    scale = 1.0 / (hd ** 0.5)
    wqkv, cqkv, g, b, wo, co = [], [], [], [], [], []
    for p in layers:
        wqkv.append(jnp.concatenate([p["wq"] * scale, p["wk"], p["wv"]], axis=1))
        cqkv.append(jnp.concatenate([p["cq"] * scale, p["ck"], p["cv"]], axis=1))
        g.append(p["g"]); b.append(p["b"]); wo.append(p["wo"]); co.append(p["co"])
    return dict(wqkv=jnp.stack(wqkv), cqkv=jnp.stack(cqkv),
                g=jnp.stack(g), b=jnp.stack(b),
                wo=jnp.stack(wo), co=jnp.stack(co))


# --------------------------------------------------------------------------
# Full encoder forward (Pallas kernels) and a pure-jnp reference
# --------------------------------------------------------------------------
def encoder_forward(x, mask_bool, params, num_heads):
    B, S, D = x.shape
    assert D % num_heads == 0
    mask_f = mask_bool.astype(jnp.float32)
    mask_k = mask_f.reshape(B, 1, S)
    mask_q = mask_f.reshape(B, S, 1)

    h = x.reshape(B * S, D)
    if params["before"]:
        h = resblock_stack_apply(h, _stack_resblocks(params["before"]))
    h = h.reshape(B, S, D)
    if params["layers"]:
        sp = _stack_tlayers(params["layers"], num_heads, D)
        h = tlayer_stack_apply(h, mask_k, mask_q, sp, num_heads)
    h = h.reshape(B * S, D)
    if params["after"]:
        h = resblock_stack_apply(h, _stack_resblocks(params["after"]))
    return h.reshape(B, S, D)


def _ref_resblock(x, p):
    h = _layernorm(x, p["g1"], p["b1"])
    h = jnp.maximum(h, 0.0) @ p["w1"] + p["c1"]
    h = _layernorm(h, p["g2"], p["b2"])
    h = jnp.maximum(h, 0.0) @ p["w2"] + p["c2"]
    return h + x


def _ref_tlayer(x, mask_bool, p, H):
    B, S, D = x.shape
    hd = D // H
    h = jnp.maximum(_layernorm(x, p["g"], p["b"]), 0.0)
    q = (h @ p["wq"] + p["cq"]).reshape(B, S, H, hd).transpose(0, 2, 1, 3)
    k = (h @ p["wk"] + p["ck"]).reshape(B, S, H, hd).transpose(0, 2, 1, 3)
    v = (h @ p["wv"] + p["cv"]).reshape(B, S, H, hd).transpose(0, 2, 1, 3)
    s = jnp.einsum("bhqd,bhkd->bhqk", q, k) / jnp.sqrt(hd).astype(jnp.float32)
    s = jnp.where(mask_bool[:, None, None, :], -1e30, s)
    a = jax.nn.softmax(s, axis=-1)
    o = jnp.einsum("bhqk,bhkd->bhqd", a, v).transpose(0, 2, 1, 3).reshape(B, S, D)
    o = o @ p["wo"] + p["co"]
    o = jnp.where(mask_bool[..., None], 0.0, o)
    return x + o


def encoder_reference(x, mask_bool, params, num_heads):
    for p in params["before"]:
        x = _ref_resblock(x, p)
    for p in params["layers"]:
        x = _ref_tlayer(x, mask_bool, p, num_heads)
    for p in params["after"]:
        x = _ref_resblock(x, p)
    return x


if __name__ == "__main__":
    # Small but lane-dense shapes: D=128 keeps every last dim a full 128-lane
    # multiple (unmasked stores) and the fused QKV output 384-wide for the MXU.
    B, S, D = 2, 16, 128
    num_heads = 4          # head_dim = 32
    num_layers = 2
    n_before, n_after = 1, 1
    # value_size == key_size == D (required for the torch module's q=k=v call).

    key = jax.random.PRNGKey(0)
    kx, kp = jax.random.split(key)
    x = jax.random.normal(kx, (B, S, D), jnp.float32)
    # key_padding_mask: True == padded (ignore).  Lengths 13 and 9.
    lengths = jnp.array([13, 9], dtype=jnp.int32)
    mask = jnp.arange(S)[None, :] >= lengths[:, None]    # (B, S) bool

    params = init_params(kp, D, n_before, num_layers, n_after)

    out = jax.block_until_ready(encoder_forward(x, mask, params, num_heads))
    ref = jax.block_until_ready(encoder_reference(x, mask, params, num_heads))

    assert out.shape == (B, S, D)
    assert jnp.allclose(out, ref, atol=2e-2, rtol=2e-2), "mismatch vs reference"

    print("KERNEL_OK")
</pallas_src>

<mosaic_0001>
module attributes {stable_mosaic.version = 11 : i64} {
  func.func @resblock_stack_kernel(%arg0: i32, %arg1: i32, %arg2: memref<32x128xf32, #tpu.memory_space<vmem>>, %arg3: memref<1x1x128xf32, #tpu.memory_space<vmem>>, %arg4: memref<1x1x128xf32, #tpu.memory_space<vmem>>, %arg5: memref<1x128x128xf32, #tpu.memory_space<vmem>>, %arg6: memref<1x1x128xf32, #tpu.memory_space<vmem>>, %arg7: memref<1x1x128xf32, #tpu.memory_space<vmem>>, %arg8: memref<1x1x128xf32, #tpu.memory_space<vmem>>, %arg9: memref<1x128x128xf32, #tpu.memory_space<vmem>>, %arg10: memref<1x1x128xf32, #tpu.memory_space<vmem>>, %arg11: memref<32x128xf32, #tpu.memory_space<vmem>>) attributes {dimension_semantics = [#tpu.dimension_semantics<parallel>, #tpu.dimension_semantics<arbitrary>], iteration_bounds = array<i64: 1, 1>, scalar_prefetch = 0 : i64, scratch_operands = 0 : i64, tpu.core_type = #tpu.core_type<tc>, window_params = [{transform_indices = @transform_0, window_bounds = array<i64: 32, 128>}, {transform_indices = @transform_1, window_bounds = array<i64: 1, 1, 128>}, {transform_indices = @transform_2, window_bounds = array<i64: 1, 1, 128>}, {transform_indices = @transform_3, window_bounds = array<i64: 1, 128, 128>}, {transform_indices = @transform_4, window_bounds = array<i64: 1, 1, 128>}, {transform_indices = @transform_5, window_bounds = array<i64: 1, 1, 128>}, {transform_indices = @transform_6, window_bounds = array<i64: 1, 1, 128>}, {transform_indices = @transform_7, window_bounds = array<i64: 1, 128, 128>}, {transform_indices = @transform_8, window_bounds = array<i64: 1, 1, 128>}, {transform_indices = @transform_9, window_bounds = array<i64: 32, 128>}]} {
    %c0_i32 = arith.constant 0 : i32
    %0 = arith.cmpi eq, %arg1, %c0_i32 : i32
    %1 = arith.extui %0 : i1 to i32
    %c0_i32_0 = arith.constant 0 : i32
    %2 = arith.cmpi ne, %1, %c0_i32_0 : i32
    scf.if %2 {
      %c0_41 = arith.constant 0 : index
      %c0_42 = arith.constant 0 : index
      %76 = vector.load %arg2[%c0_41, %c0_42] : memref<32x128xf32, #tpu.memory_space<vmem>>, vector<32x128xf32>
      %c0_43 = arith.constant 0 : index
      %c0_44 = arith.constant 0 : index
      %77 = vector.load %arg11[%c0_43, %c0_44] : memref<32x128xf32, #tpu.memory_space<vmem>>, vector<32x128xf32>
      tpu.vector_store %arg11[%c0_43, %c0_44], %76 {strides = array<i32>} : memref<32x128xf32, #tpu.memory_space<vmem>>, vector<32x128xf32>,
    } else {
    }
    %c0 = arith.constant 0 : index
    %c0_1 = arith.constant 0 : index
    %3 = vector.load %arg11[%c0, %c0_1] : memref<32x128xf32, #tpu.memory_space<vmem>>, vector<32x128xf32>
    %c0_2 = arith.constant 0 : index
    %c0_3 = arith.constant 0 : index
    %c0_4 = arith.constant 0 : index
    %4 = vector.load %arg3[%c0_2, %c0_3, %c0_4] : memref<1x1x128xf32, #tpu.memory_space<vmem>>, vector<1x1x128xf32>
    %5 = vector.shape_cast %4 : vector<1x1x128xf32> to vector<1x128xf32>
    %c0_5 = arith.constant 0 : index
    %c0_6 = arith.constant 0 : index
    %c0_7 = arith.constant 0 : index
    %6 = vector.load %arg4[%c0_5, %c0_6, %c0_7] : memref<1x1x128xf32, #tpu.memory_space<vmem>>, vector<1x1x128xf32>
    %7 = vector.shape_cast %6 : vector<1x1x128xf32> to vector<1x128xf32>
    %cst = arith.constant dense<0.000000e+00> : vector<32xf32>
    %8 = vector.multi_reduction <add>, %3, %cst [1] : vector<32x128xf32> to vector<32xf32>
    %9 = vector.shape_cast %8 : vector<32xf32> to vector<32x1xf32>
    %cst_8 = arith.constant 1.280000e+02 : f32
    %10 = vector.broadcast %cst_8 : f32 to vector<32x1xf32>
    %11 = arith.divf %9, %10 : vector<32x1xf32>
    %12 = vector.broadcast %11 : vector<32x1xf32> to vector<32x128xf32>
    %13 = arith.subf %3, %12 : vector<32x128xf32>
    %14 = arith.mulf %13, %13 : vector<32x128xf32>
    %cst_9 = arith.constant dense<0.000000e+00> : vector<32xf32>
    %15 = vector.multi_reduction <add>, %14, %cst_9 [1] : vector<32x128xf32> to vector<32xf32>
    %16 = vector.shape_cast %15 : vector<32xf32> to vector<32x1xf32>
    %cst_10 = arith.constant 1.280000e+02 : f32
    %17 = vector.broadcast %cst_10 : f32 to vector<32x1xf32>
    %18 = arith.divf %16, %17 : vector<32x1xf32>
    %19 = vector.broadcast %11 : vector<32x1xf32> to vector<32x128xf32>
    %20 = arith.subf %3, %19 : vector<32x128xf32>
    %cst_11 = arith.constant 9.99999974E-6 : f32
    %21 = vector.broadcast %cst_11 : f32 to vector<32x1xf32>
    %22 = arith.addf %18, %21 : vector<32x1xf32>
    %23 = math.rsqrt %22 : vector<32x1xf32>
    %24 = vector.broadcast %23 : vector<32x1xf32> to vector<32x128xf32>
    %25 = arith.mulf %20, %24 : vector<32x128xf32>
    %26 = vector.broadcast %5 : vector<1x128xf32> to vector<32x128xf32>
    %27 = arith.mulf %25, %26 : vector<32x128xf32>
    %28 = vector.broadcast %7 : vector<1x128xf32> to vector<32x128xf32>
    %29 = arith.addf %27, %28 : vector<32x128xf32>
    %cst_12 = arith.constant 0.000000e+00 : f32
    %30 = vector.broadcast %cst_12 : f32 to vector<32x128xf32>
    %31 = arith.maximumf %29, %30 : vector<32x128xf32>
    %c0_13 = arith.constant 0 : index
    %c0_14 = arith.constant 0 : index
    %c0_15 = arith.constant 0 : index
    %32 = vector.load %arg5[%c0_13, %c0_14, %c0_15] : memref<1x128x128xf32, #tpu.memory_space<vmem>>, vector<1x128x128xf32>
    %33 = vector.shape_cast %32 : vector<1x128x128xf32> to vector<128x128xf32>
    %cst_16 = arith.constant dense<0.000000e+00> : vector<32x128xf32>
    %34 = tpu.matmul %31, %33, %cst_16 {dimension_numbers = #tpu.dot_dimension_numbers<[1], [0], [0], [1], [0, 0, 1, 1], [], []>} : vector<32x128xf32>, vector<128x128xf32>, vector<32x128xf32> -> vector<32x128xf32>
    %c0_17 = arith.constant 0 : index
    %c0_18 = arith.constant 0 : index
    %c0_19 = arith.constant 0 : index
    %35 = vector.load %arg6[%c0_17, %c0_18, %c0_19] : memref<1x1x128xf32, #tpu.memory_space<vmem>>, vector<1x1x128xf32>
    %36 = vector.shape_cast %35 : vector<1x1x128xf32> to vector<1x128xf32>
    %37 = vector.broadcast %36 : vector<1x128xf32> to vector<32x128xf32>
    %38 = arith.addf %34, %37 : vector<32x128xf32>
    %c0_20 = arith.constant 0 : index
    %c0_21 = arith.constant 0 : index
    %c0_22 = arith.constant 0 : index
    %39 = vector.load %arg7[%c0_20, %c0_21, %c0_22] : memref<1x1x128xf32, #tpu.memory_space<vmem>>, vector<1x1x128xf32>
    %40 = vector.shape_cast %39 : vector<1x1x128xf32> to vector<1x128xf32>
    %c0_23 = arith.constant 0 : index
    %c0_24 = arith.constant 0 : index
    %c0_25 = arith.constant 0 : index
    %41 = vector.load %arg8[%c0_23, %c0_24, %c0_25] : memref<1x1x128xf32, #tpu.memory_space<vmem>>, vector<1x1x128xf32>
    %42 = vector.shape_cast %41 : vector<1x1x128xf32> to vector<1x128xf32>
    %cst_26 = arith.constant dense<0.000000e+00> : vector<32xf32>
    %43 = vector.multi_reduction <add>, %38, %cst_26 [1] : vector<32x128xf32> to vector<32xf32>
    %44 = vector.shape_cast %43 : vector<32xf32> to vector<32x1xf32>
    %cst_27 = arith.constant 1.280000e+02 : f32
    %45 = vector.broadcast %cst_27 : f32 to vector<32x1xf32>
    %46 = arith.divf %44, %45 : vector<32x1xf32>
    %47 = vector.broadcast %46 : vector<32x1xf32> to vector<32x128xf32>
    %48 = arith.subf %38, %47 : vector<32x128xf32>
    %49 = arith.mulf %48, %48 : vector<32x128xf32>
    %cst_28 = arith.constant dense<0.000000e+00> : vector<32xf32>
    %50 = vector.multi_reduction <add>, %49, %cst_28 [1] : vector<32x128xf32> to vector<32xf32>
    %51 = vector.shape_cast %50 : vector<32xf32> to vector<32x1xf32>
    %cst_29 = arith.constant 1.280000e+02 : f32
    %52 = vector.broadcast %cst_29 : f32 to vector<32x1xf32>
    %53 = arith.divf %51, %52 : vector<32x1xf32>
    %54 = vector.broadcast %46 : vector<32x1xf32> to vector<32x128xf32>
    %55 = arith.subf %38, %54 : vector<32x128xf32>
    %cst_30 = arith.constant 9.99999974E-6 : f32
    %56 = vector.broadcast %cst_30 : f32 to vector<32x1xf32>
    %57 = arith.addf %53, %56 : vector<32x1xf32>
    %58 = math.rsqrt %57 : vector<32x1xf32>
    %59 = vector.broadcast %58 : vector<32x1xf32> to vector<32x128xf32>
    %60 = arith.mulf %55, %59 : vector<32x128xf32>
    %61 = vector.broadcast %40 : vector<1x128xf32> to vector<32x128xf32>
    %62 = arith.mulf %60, %61 : vector<32x128xf32>
    %63 = vector.broadcast %42 : vector<1x128xf32> to vector<32x128xf32>
    %64 = arith.addf %62, %63 : vector<32x128xf32>
    %cst_31 = arith.constant 0.000000e+00 : f32
    %65 = vector.broadcast %cst_31 : f32 to vector<32x128xf32>
    %66 = arith.maximumf %64, %65 : vector<32x128xf32>
    %c0_32 = arith.constant 0 : index
    %c0_33 = arith.constant 0 : index
    %c0_34 = arith.constant 0 : index
    %67 = vector.load %arg9[%c0_32, %c0_33, %c0_34] : memref<1x128x128xf32, #tpu.memory_space<vmem>>, vector<1x128x128xf32>
    %68 = vector.shape_cast %67 : vector<1x128x128xf32> to vector<128x128xf32>
    %cst_35 = arith.constant dense<0.000000e+00> : vector<32x128xf32>
    %69 = tpu.matmul %66, %68, %cst_35 {dimension_numbers = #tpu.dot_dimension_numbers<[1], [0], [0], [1], [0, 0, 1, 1], [], []>} : vector<32x128xf32>, vector<128x128xf32>, vector<32x128xf32> -> vector<32x128xf32>
    %c0_36 = arith.constant 0 : index
    %c0_37 = arith.constant 0 : index
    %c0_38 = arith.constant 0 : index
    %70 = vector.load %arg10[%c0_36, %c0_37, %c0_38] : memref<1x1x128xf32, #tpu.memory_space<vmem>>, vector<1x1x128xf32>
    %71 = vector.shape_cast %70 : vector<1x1x128xf32> to vector<1x128xf32>
    %72 = vector.broadcast %71 : vector<1x128xf32> to vector<32x128xf32>
    %73 = arith.addf %69, %72 : vector<32x128xf32>
    %74 = arith.addf %3, %73 : vector<32x128xf32>
    %c0_39 = arith.constant 0 : index
    %c0_40 = arith.constant 0 : index
    %75 = vector.load %arg11[%c0_39, %c0_40] : memref<32x128xf32, #tpu.memory_space<vmem>>, vector<32x128xf32>
    tpu.vector_store %arg11[%c0_39, %c0_40], %74 {strides = array<i32>} : memref<32x128xf32, #tpu.memory_space<vmem>>, vector<32x128xf32>,
    return
  }
  func.func @transform_0(%arg0: i32, %arg1: i32) -> (i32, i32) {
    %c0_i32 = arith.constant 0 : i32
    %c0_i32_0 = arith.constant 0 : i32
    return %arg0, %c0_i32 : i32, i32
  }
  func.func @transform_1(%arg0: i32, %arg1: i32) -> (i32, i32, i32) {
    %c0_i32 = arith.constant 0 : i32
    %c0_i32_0 = arith.constant 0 : i32
    %c0_i32_1 = arith.constant 0 : i32
    return %arg1, %c0_i32, %c0_i32_0 : i32, i32, i32
  }
  func.func @transform_2(%arg0: i32, %arg1: i32) -> (i32, i32, i32) {
    %c0_i32 = arith.constant 0 : i32
    %c0_i32_0 = arith.constant 0 : i32
    %c0_i32_1 = arith.constant 0 : i32
    return %arg1, %c0_i32, %c0_i32_0 : i32, i32, i32
  }
  func.func @transform_3(%arg0: i32, %arg1: i32) -> (i32, i32, i32) {
    %c0_i32 = arith.constant 0 : i32
    %c0_i32_0 = arith.constant 0 : i32
    %c0_i32_1 = arith.constant 0 : i32
    return %arg1, %c0_i32, %c0_i32_0 : i32, i32, i32
  }
  func.func @transform_4(%arg0: i32, %arg1: i32) -> (i32, i32, i32) {
    %c0_i32 = arith.constant 0 : i32
    %c0_i32_0 = arith.constant 0 : i32
    %c0_i32_1 = arith.constant 0 : i32
    return %arg1, %c0_i32, %c0_i32_0 : i32, i32, i32
  }
  func.func @transform_5(%arg0: i32, %arg1: i32) -> (i32, i32, i32) {
    %c0_i32 = arith.constant 0 : i32
    %c0_i32_0 = arith.constant 0 : i32
    %c0_i32_1 = arith.constant 0 : i32
    return %arg1, %c0_i32, %c0_i32_0 : i32, i32, i32
  }
  func.func @transform_6(%arg0: i32, %arg1: i32) -> (i32, i32, i32) {
    %c0_i32 = arith.constant 0 : i32
    %c0_i32_0 = arith.constant 0 : i32
    %c0_i32_1 = arith.constant 0 : i32
    return %arg1, %c0_i32, %c0_i32_0 : i32, i32, i32
  }
  func.func @transform_7(%arg0: i32, %arg1: i32) -> (i32, i32, i32) {
    %c0_i32 = arith.constant 0 : i32
    %c0_i32_0 = arith.constant 0 : i32
    %c0_i32_1 = arith.constant 0 : i32
    return %arg1, %c0_i32, %c0_i32_0 : i32, i32, i32
  }
  func.func @transform_8(%arg0: i32, %arg1: i32) -> (i32, i32, i32) {
    %c0_i32 = arith.constant 0 : i32
    %c0_i32_0 = arith.constant 0 : i32
    %c0_i32_1 = arith.constant 0 : i32
    return %arg1, %c0_i32, %c0_i32_0 : i32, i32, i32
  }
  func.func @transform_9(%arg0: i32, %arg1: i32) -> (i32, i32) {
    %c0_i32 = arith.constant 0 : i32
    %c0_i32_0 = arith.constant 0 : i32
    return %arg0, %c0_i32 : i32, i32
  }
}

</mosaic_0001>

<llo_original>
// kernel: tpu_custom_call.1
$region0: #{tpu_custom_call.1}
  #allocation0 [shape = 'u32[]', space=smem, size = 0x4, offset = 0x4, fixed_abs, tag = 'smem constant byte address 0x4 - core index']
  #allocation1 [shape = 'u32[72,128]{1,0:T(1,128)}', space=vmem, size = 0x9000, scoped, tag = 'internal scratch']
  %s0 = inlined_call_operand.hbm [shape: f32[32,128], index: 0, kind: input, shape index: {}]
  %s1 = inlined_call_operand.hbm [shape: f32[1,1,128], index: 1, kind: input, shape index: {}]
  %s2 = inlined_call_operand.vmem [shape: f32[1,1,128], index: 2, kind: input, shape index: {}]
  %s3 = inlined_call_operand.hbm [shape: f32[1,128,128], index: 3, kind: input, shape index: {}]
  %s4 = inlined_call_operand.vmem [shape: f32[1,1,128], index: 4, kind: input, shape index: {}]
  %s5 = inlined_call_operand.vmem [shape: f32[1,1,128], index: 5, kind: input, shape index: {}]
  %s6 = inlined_call_operand.vmem [shape: f32[1,1,128], index: 6, kind: input, shape index: {}]
  %s7 = inlined_call_operand.hbm [shape: f32[1,128,128], index: 7, kind: input, shape index: {}]
  %s8 = inlined_call_operand.vmem [shape: f32[1,1,128], index: 8, kind: input, shape index: {}]
  %s9 = inlined_call_operand.hbm [shape: f32[32,128], index: 9, kind: output, shape index: {}]
  %s10 = sld [smem:[#allocation0]]
  $region66: #{tpu_custom_call.1} parent=0
    _
  %s12 = ssub.s32 1, %s10
  %s13 = scalar_select 0, %s12, %s10
  $region1: #{tpu_custom_call.1} parent=0
    #allocation2 [shape = 'u8[16384]{0}', space=vmem, size = 0x4000, scoped, tag = 'input window, operand 0, single buffered']
    #allocation3 [shape = 's32[1]{0}', space=sflag, size = 0x4, scoped, tag = 'scoped memory for tpu_custom_call.1']
    #allocation4 [shape = 's32[1]{0}', space=sflag, size = 0x4, scoped, tag = 'scoped memory for tpu_custom_call.1']
    #allocation5 [shape = 'u8[512]{0}', space=vmem, size = 0x400, scoped, tag = 'input window, operand 1, single buffered']
    #allocation6 [shape = 's32[1]{0}', space=sflag, size = 0x4, scoped, tag = 'scoped memory for tpu_custom_call.1']
    #allocation7 [shape = 'u8[65536]{0}', space=vmem, size = 0x10000, scoped, tag = 'input window, operand 3, single buffered']
    #allocation8 [shape = 'u8[65536]{0}', space=vmem, size = 0x10000, scoped, tag = 'input window, operand 7, single buffered']
    #allocation9 [shape = 's32[1]{0}', space=sflag, size = 0x4, scoped, tag = 'scoped memory for tpu_custom_call.1']
    #allocation10 [shape = 'u8[16384]{0}', space=vmem, size = 0x4000, scoped, tag = 'output window, operand 0, single buffered']
    %14 = vsyncpa [#allocation3], 0
    %15 = vsyncpa [#allocation6], 0
    %16 = vsyncpa [#allocation9], 0
    %17 = vsyncpa [#allocation4], 0
    // Predicated region
    $region2: #{tpu_custom_call.1} parent=1 // pred_check
      _
    $region3: #{tpu_custom_call.1} parent=1 // pred_check_branch
      %19 = sbr.rel (0) target = $region5
    $region4: #{tpu_custom_call.1} parent=1 // pred_region
      %21 = vsyncadd [#allocation3], 0
      %s22 = sshll.u32 %s0, 4
      %s23 = int_to_ptr.hbm [resolvable:$true] %s22
      %s24 = sshll.u32 [#allocation2], 4
      %s25 = int_to_ptr.vmem [resolvable:$true] %s24
      %30 = dma.hbm_to_vmem [thread:$0]  %s23, 512, %s25, [#allocation3], 128, 128, 8
    $region5: #{tpu_custom_call.1} parent=1 // pred_fallthru
      _
    // Predicated region
    $region6: #{tpu_custom_call.1} parent=1 // pred_check
      _
    $region7: #{tpu_custom_call.1} parent=1 // pred_check_branch
      %32 = sbr.rel (0) target = $region9
    $region8: #{tpu_custom_call.1} parent=1 // pred_region
      %34 = vsyncadd [#allocation6], 0
      %s36 = sshll.u32 %s1, 4
      %s37 = int_to_ptr.hbm [resolvable:$true] %s36
      %s38 = sshll.u32 [#allocation5], 4
      %s39 = int_to_ptr.vmem [resolvable:$true] %s38
      %41 = dma.hbm_to_vmem [thread:$0]  %s37, 16, %s39, [#allocation6]
    $region9: #{tpu_custom_call.1} parent=1 // pred_fallthru
      _
    // Predicated region
    $region10: #{tpu_custom_call.1} parent=1 // pred_check
      _
    $region11: #{tpu_custom_call.1} parent=1 // pred_check_branch
      %43 = sbr.rel (0) target = $region13
    $region12: #{tpu_custom_call.1} parent=1 // pred_region
      _
    $region13: #{tpu_custom_call.1} parent=1 // pred_fallthru
      _
    // Predicated region
    $region14: #{tpu_custom_call.1} parent=1 // pred_check
      _
    $region15: #{tpu_custom_call.1} parent=1 // pred_check_branch
      %45 = sbr.rel (0) target = $region17
    $region16: #{tpu_custom_call.1} parent=1 // pred_region
      %47 = vsyncadd [#allocation6], 0
      %s48 = sshll.u32 %s3, 4
      %s49 = int_to_ptr.hbm [resolvable:$true] %s48
      %s50 = sshll.u32 [#allocation7], 4
      %s51 = int_to_ptr.vmem [resolvable:$true] %s50
      %56 = dma.hbm_to_vmem [thread:$0]  %s49, 2048, %s51, [#allocation6], 128, 128, 8
    $region17: #{tpu_custom_call.1} parent=1 // pred_fallthru
      _
    // Predicated region
    $region18: #{tpu_custom_call.1} parent=1 // pred_check
      _
    $region19: #{tpu_custom_call.1} parent=1 // pred_check_branch
      %58 = sbr.rel (0) target = $region21
    $region20: #{tpu_custom_call.1} parent=1 // pred_region
      _
    $region21: #{tpu_custom_call.1} parent=1 // pred_fallthru
      _
    // Predicated region
    $region22: #{tpu_custom_call.1} parent=1 // pred_check
      _
    $region23: #{tpu_custom_call.1} parent=1 // pred_check_branch
      %60 = sbr.rel (0) target = $region25
    $region24: #{tpu_custom_call.1} parent=1 // pred_region
      _
    $region25: #{tpu_custom_call.1} parent=1 // pred_fallthru
      _
    // Predicated region
    $region26: #{tpu_custom_call.1} parent=1 // pred_check
      _
    $region27: #{tpu_custom_call.1} parent=1 // pred_check_branch
      %62 = sbr.rel (0) target = $region29
    $region28: #{tpu_custom_call.1} parent=1 // pred_region
      _
    $region29: #{tpu_custom_call.1} parent=1 // pred_fallthru
      _
    // Predicated region
    $region30: #{tpu_custom_call.1} parent=1 // pred_check
      _
    $region31: #{tpu_custom_call.1} parent=1 // pred_check_branch
      %64 = sbr.rel (0) target = $region33
    $region32: #{tpu_custom_call.1} parent=1 // pred_region
      %66 = vsyncadd [#allocation9], 0
      %s67 = sshll.u32 %s7, 4
      %s68 = int_to_ptr.hbm [resolvable:$true] %s67
      %s69 = sshll.u32 [#allocation8], 4
      %s70 = int_to_ptr.vmem [resolvable:$true] %s69
      %75 = dma.hbm_to_vmem [thread:$0]  %s68, 2048, %s70, [#allocation9], 128, 128, 8
    $region33: #{tpu_custom_call.1} parent=1 // pred_fallthru
      _
    // Predicated region
    $region34: #{tpu_custom_call.1} parent=1 // pred_check
      _
    $region35: #{tpu_custom_call.1} parent=1 // pred_check_branch
      %77 = sbr.rel (0) target = $region37
    $region36: #{tpu_custom_call.1} parent=1 // pred_region
      _
    $region37: #{tpu_custom_call.1} parent=1 // pred_fallthru
      _
    // Predicated region
    $region38: #{tpu_custom_call.1} parent=1 // pred_check
      _
    $region39: #{tpu_custom_call.1} parent=1 // pred_check_branch
      %79 = sbr.rel (0) target = $region41
    $region40: #{tpu_custom_call.1} parent=1 // pred_region
      %81 = dma.done [#allocation3], 512
    $region41: #{tpu_custom_call.1} parent=1 // pred_fallthru
      _
    // Predicated region
    $region42: #{tpu_custom_call.1} parent=1 // pred_check
      _
    $region43: #{tpu_custom_call.1} parent=1 // pred_check_branch
      %83 = sbr.rel (0) target = $region45
    $region44: #{tpu_custom_call.1} parent=1 // pred_region
      %85 = dma.done [#allocation6], 16
    $region45: #{tpu_custom_call.1} parent=1 // pred_fallthru
      _
    // Predicated region
    $region46: #{tpu_custom_call.1} parent=1 // pred_check
      _
    $region47: #{tpu_custom_call.1} parent=1 // pred_check_branch
      %87 = sbr.rel (0) target = $region49
    $region48: #{tpu_custom_call.1} parent=1 // pred_region
      %89 = dma.done [#allocation6], 2048
    $region49: #{tpu_custom_call.1} parent=1 // pred_fallthru
      _
    // Predicated region
    $region50: #{tpu_custom_call.1} parent=1 // pred_check
      _
    $region51: #{tpu_custom_call.1} parent=1 // pred_check_branch
      %91 = sbr.rel (0) target = $region53
    $region52: #{tpu_custom_call.1} parent=1 // pred_region
      %93 = dma.done [#allocation9], 2048
    $region53: #{tpu_custom_call.1} parent=1 // pred_fallthru
      _
    %p94 = scmp.eq.s32.totalorder 0, 0
    // Predicated region
    $region54: #{tpu_custom_call.1} parent=1 // pred_check
      %p95 = pneg %p94
    $region55: #{tpu_custom_call.1} parent=1 // pred_check_branch
      %97 = sbr.rel (%p95) target = $region57
    $region56: #{tpu_custom_call.1} parent=1 // pred_region
      %v98 = vld [vmem:[#allocation2] sm:$0xff]
      %v99 = vld [vmem:[#allocation2 + $0x8] sm:$0xff]
      %v100 = vld [vmem:[#allocation2 + $0x10] sm:$0xff]
      %v101 = vld [vmem:[#allocation2 + $0x18] sm:$0xff]
      %102 = vst [vmem:[#allocation10] sm:$0xff] %v98
      %103 = vst [vmem:[#allocation10 + $0x8] sm:$0xff] %v99
      %104 = vst [vmem:[#allocation10 + $0x10] sm:$0xff] %v100
      %105 = vst [vmem:[#allocation10 + $0x18] sm:$0xff] %v101
    $region57: #{tpu_custom_call.1} parent=1 // pred_fallthru
      _
    %v106 = vld [vmem:[#allocation10] sm:$0xff]
    %v107 = vld [vmem:[#allocation10 + $0x8] sm:$0xff]
    %v108 = vld [vmem:[#allocation10 + $0x10] sm:$0xff]
    %v109 = vld [vmem:[#allocation10 + $0x18] sm:$0xff]
    %v110 = vld [vmem:[#allocation5] sm:$0x1]
    %v111 = vld [vmem:[%s2] sm:$0x1]
    %112 = vadd.xlane.f32.xlu0 %v106
    %v113 = vpop.xlane.xlu0 %112
    %114 = vadd.xlane.f32.xlu0 %v107
    %v115 = vpop.xlane.xlu0 %114
    %116 = vadd.xlane.f32.xlu0 %v108
    %v117 = vpop.xlane.xlu0 %116
    %118 = vadd.xlane.f32.xlu0 %v109
    %v119 = vpop.xlane.xlu0 %118
    %v120 = vrcp.pop 128.0
    %v121 = vmul.f32 128.0, %v120
    %v122 = vsub.f32 1.0, %v121
    %v123 = vmul.f32 %v120, %v122
    %v124 = vadd.f32 %v120, %v123
    %vm125 = vweird.f32 %v120
    %v126 = vsel %vm125, %v120, %v124
    %v127 = vmul.f32 %v113, %v126
    %v128 = vmul.f32 %v115, %v126
    %v129 = vmul.f32 %v117, %v126
    %v130 = vmul.f32 %v119, %v126
    %v131 = vsub.f32 %v106, %v127
    %v132 = vsub.f32 %v107, %v128
    %v133 = vsub.f32 %v108, %v129
    %v134 = vsub.f32 %v109, %v130
    %v135 = vmul.f32 %v131, %v131
    %v136 = vmul.f32 %v132, %v132
    %v137 = vmul.f32 %v133, %v133
    %v138 = vmul.f32 %v134, %v134
    %139 = vadd.xlane.f32.xlu0 %v135
    %v140 = vpop.xlane.xlu0 %139
    %141 = vadd.xlane.f32.xlu0 %v136
    %v142 = vpop.xlane.xlu0 %141
    %143 = vadd.xlane.f32.xlu0 %v137
    %v144 = vpop.xlane.xlu0 %143
    %145 = vadd.xlane.f32.xlu0 %v138
    %v146 = vpop.xlane.xlu0 %145
    %v147 = vmul.f32 %v140, %v126
    %v148 = vmul.f32 %v142, %v126
    %v149 = vmul.f32 %v144, %v126
    %v150 = vmul.f32 %v146, %v126
    %v151 = vadd.f32 %v147, 1e-05
    %v152 = vadd.f32 %v148, 1e-05
    %v153 = vadd.f32 %v149, 1e-05
    %v154 = vadd.f32 %v150, 1e-05
    %v155 = vrsqrt.pop %v151
    %v156 = vmul.f32 %v155, %v151
    %v157 = vmul.f32 %v156, %v155
    %v158 = vmul.f32 0.5, %v157
    %v159 = vsub.f32 1.5, %v158
    %v160 = vmul.f32 %v155, %v159
    %vm161 = vweird.f32 %v151
    %vm162 = vweird.f32 %v155
    %vm163 = vmor %vm161, %vm162
    %v164 = vsel %vm163, %v155, %v160
    %v165 = vrsqrt.pop %v152
    %v166 = vmul.f32 %v165, %v152
    %v167 = vmul.f32 %v166, %v165
    %v168 = vmul.f32 0.5, %v167
    %v169 = vsub.f32 1.5, %v168
    %v170 = vmul.f32 %v165, %v169
    %vm171 = vweird.f32 %v152
    %vm172 = vweird.f32 %v165
    %vm173 = vmor %vm171, %vm172
    %v174 = vsel %vm173, %v165, %v170
    %v175 = vrsqrt.pop %v153
    %v176 = vmul.f32 %v175, %v153
    %v177 = vmul.f32 %v176, %v175
    %v178 = vmul.f32 0.5, %v177
    %v179 = vsub.f32 1.5, %v178
    %v180 = vmul.f32 %v175, %v179
    %vm181 = vweird.f32 %v153
    %vm182 = vweird.f32 %v175
    %vm183 = vmor %vm181, %vm182
    %v184 = vsel %vm183, %v175, %v180
    %v185 = vrsqrt.pop %v154
    %v186 = vmul.f32 %v185, %v154
    %v187 = vmul.f32 %v186, %v185
    %v188 = vmul.f32 0.5, %v187
    %v189 = vsub.f32 1.5, %v188
    %v190 = vmul.f32 %v185, %v189
    %vm191 = vweird.f32 %v154
    %vm192 = vweird.f32 %v185
    %vm193 = vmor %vm191, %vm192
    %v194 = vsel %vm193, %v185, %v190
    %v195 = vmul.f32 %v131, %v164
    %v196 = vmul.f32 %v132, %v174
    %v197 = vmul.f32 %v133, %v184
    %v198 = vmul.f32 %v134, %v194
    %v200 = vperm.slane %v110, 0
    %v202 = vmul.f32 %v195, %v200
    %v203 = vmul.f32 %v196, %v200
    %v204 = vmul.f32 %v197, %v200
    %v205 = vmul.f32 %v198, %v200
    %v207 = vperm.slane %v111, 0
    %v209 = vadd.f32 %v202, %v207
    %v210 = vadd.f32 %v203, %v207
    %v211 = vadd.f32 %v204, %v207
    %v212 = vadd.f32 %v205, %v207
    %v213 = vmax.f32 %v209, 0.0
    %v214 = vmax.f32 %v210, 0.0
    %v215 = vmax.f32 %v211, 0.0
    %v216 = vmax.f32 %v212, 0.0
    %v217 = vld [vmem:[#allocation7] sm:$0xff]
    %v218 = vld [vmem:[#allocation7 + $0x8] sm:$0xff]
    %v219 = vld [vmem:[#allocation7 + $0x10] sm:$0xff]
    %v220 = vld [vmem:[#allocation7 + $0x18] sm:$0xff]
    %v221 = vld [vmem:[#allocation7 + $0x20] sm:$0xff]
    %v222 = vld [vmem:[#allocation7 + $0x28] sm:$0xff]
    %v223 = vld [vmem:[#allocation7 + $0x30] sm:$0xff]
    %v224 = vld [vmem:[#allocation7 + $0x38] sm:$0xff]
    %v225 = vld [vmem:[#allocation7 + $0x40] sm:$0xff]
    %v226 = vld [vmem:[#allocation7 + $0x48] sm:$0xff]
    %v227 = vld [vmem:[#allocation7 + $0x50] sm:$0xff]
    %v228 = vld [vmem:[#allocation7 + $0x58] sm:$0xff]
    %v229 = vld [vmem:[#allocation7 + $0x60] sm:$0xff]
    %v230 = vld [vmem:[#allocation7 + $0x68] sm:$0xff]
    %v231 = vld [vmem:[#allocation7 + $0x70] sm:$0xff]
    %v232 = vld [vmem:[#allocation7 + $0x78] sm:$0xff]
    %v233 = vld [vmem:[%s4] sm:$0x1]
    %v235 = vperm.slane %v233, 0
    %237 = vmatpush.msra.mxu0 %v232
    %238 = vmatpush.msra.mxu0 %v231
    %239 = vmatpush.msra.mxu0 %v230
    %240 = vmatpush.msra.mxu0 %v229
    %241 = vmatpush.msra.mxu0 %v228
    %242 = vmatpush.msra.mxu0 %v227
    %243 = vmatpush.msra.mxu0 %v226
    %244 = vmatpush.msra.mxu0 %v225
    %245 = vmatpush.msra.mxu0 %v224
    %246 = vmatpush.msra.mxu0 %v223
    %247 = vmatpush.msra.mxu0 %v222
    %248 = vmatpush.msra.mxu0 %v221
    %249 = vmatpush.msra.mxu0 %v220
    %250 = vmatpush.msra.mxu0 %v219
    %251 = vmatpush.msra.mxu0 %v218
    %252 = vmatpush.msra.mxu0 %v217
    %253 = vmatmul.f32.gmra.mxu0 %v213
    %v254 = vpop.f32.mrf.mxu0
    %v255 = vadd.f32 %v235, %v254
    %256 = vmatmul.f32.gmra.mxu0 %v214
    %v257 = vpop.f32.mrf.mxu0
    %v258 = vadd.f32 %v235, %v257
    %259 = vmatmul.f32.gmra.mxu0 %v215
    %v260 = vpop.f32.mrf.mxu0
    %v261 = vadd.f32 %v235, %v260
    %262 = vmatmul.f32.gmra.mxu0 %v216
    %v263 = vpop.f32.mrf.mxu0
    %v264 = vadd.f32 %v235, %v263
    %265 = vdwg.mxu0
    %v266 = vld [vmem:[%s5] sm:$0x1]
    %v267 = vld [vmem:[%s6] sm:$0x1]
    %268 = vadd.xlane.f32.xlu0 %v255
    %v269 = vpop.xlane.xlu0 %268
    %270 = vadd.xlane.f32.xlu0 %v258
    %v271 = vpop.xlane.xlu0 %270
    %272 = vadd.xlane.f32.xlu0 %v261
    %v273 = vpop.xlane.xlu0 %272
    %274 = vadd.xlane.f32.xlu0 %v264
    %v275 = vpop.xlane.xlu0 %274
    %v276 = vmul.f32 %v269, %v126
    %v277 = vmul.f32 %v271, %v126
    %v278 = vmul.f32 %v273, %v126
    %v279 = vmul.f32 %v275, %v126
    %v280 = vsub.f32 %v255, %v276
    %v281 = vsub.f32 %v258, %v277
    %v282 = vsub.f32 %v261, %v278
    %v283 = vsub.f32 %v264, %v279
    %v284 = vmul.f32 %v280, %v280
    %v285 = vmul.f32 %v281, %v281
    %v286 = vmul.f32 %v282, %v282
    %v287 = vmul.f32 %v283, %v283
    %288 = vadd.xlane.f32.xlu0 %v284
    %v289 = vpop.xlane.xlu0 %288
    %290 = vadd.xlane.f32.xlu0 %v285
    %v291 = vpop.xlane.xlu0 %290
    %292 = vadd.xlane.f32.xlu0 %v286
    %v293 = vpop.xlane.xlu0 %292
    %294 = vadd.xlane.f32.xlu0 %v287
    %v295 = vpop.xlane.xlu0 %294
    %v296 = vmul.f32 %v289, %v126
    %v297 = vmul.f32 %v291, %v126
    %v298 = vmul.f32 %v293, %v126
    %v299 = vmul.f32 %v295, %v126
    %v300 = vadd.f32 %v296, 1e-05
    %v301 = vadd.f32 %v297, 1e-05
    %v302 = vadd.f32 %v298, 1e-05
    %v303 = vadd.f32 %v299, 1e-05
    %v304 = vrsqrt.pop %v300
    %v305 = vmul.f32 %v304, %v300
    %v306 = vmul.f32 %v305, %v304
    %v307 = vmul.f32 0.5, %v306
    %v308 = vsub.f32 1.5, %v307
    %v309 = vmul.f32 %v304, %v308
    %vm310 = vweird.f32 %v300
    %vm311 = vweird.f32 %v304
    %vm312 = vmor %vm310, %vm311
    %v313 = vsel %vm312, %v304, %v309
    %v314 = vrsqrt.pop %v301
    %v315 = vmul.f32 %v314, %v301
    %v316 = vmul.f32 %v315, %v314
    %v317 = vmul.f32 0.5, %v316
    %v318 = vsub.f32 1.5, %v317
    %v319 = vmul.f32 %v314, %v318
    %vm320 = vweird.f32 %v301
    %vm321 = vweird.f32 %v314
    %vm322 = vmor %vm320, %vm321
    %v323 = vsel %vm322, %v314, %v319
    %v324 = vrsqrt.pop %v302
    %v325 = vmul.f32 %v324, %v302
    %v326 = vmul.f32 %v325, %v324
    %v327 = vmul.f32 0.5, %v326
    %v328 = vsub.f32 1.5, %v327
    %v329 = vmul.f32 %v324, %v328
    %vm330 = vweird.f32 %v302
    %vm331 = vweird.f32 %v324
    %vm332 = vmor %vm330, %vm331
    %v333 = vsel %vm332, %v324, %v329
    %v334 = vrsqrt.pop %v303
    %v335 = vmul.f32 %v334, %v303
    %v336 = vmul.f32 %v335, %v334
    %v337 = vmul.f32 0.5, %v336
    %v338 = vsub.f32 1.5, %v337
    %v339 = vmul.f32 %v334, %v338
    %vm340 = vweird.f32 %v303
    %vm341 = vweird.f32 %v334
    %vm342 = vmor %vm340, %vm341
    %v343 = vsel %vm342, %v334, %v339
    %v344 = vmul.f32 %v280, %v313
    %v345 = vmul.f32 %v281, %v323
    %v346 = vmul.f32 %v282, %v333
    %v347 = vmul.f32 %v283, %v343
    %v349 = vperm.slane %v266, 0
    %v351 = vmul.f32 %v344, %v349
    %v352 = vmul.f32 %v345, %v349
    %v353 = vmul.f32 %v346, %v349
    %v354 = vmul.f32 %v347, %v349
    %v356 = vperm.slane %v267, 0
    %v358 = vadd.f32 %v351, %v356
    %v359 = vadd.f32 %v352, %v356
    %v360 = vadd.f32 %v353, %v356
    %v361 = vadd.f32 %v354, %v356
    %v362 = vmax.f32 %v358, 0.0
    %v363 = vmax.f32 %v359, 0.0
    %v364 = vmax.f32 %v360, 0.0
    %v365 = vmax.f32 %v361, 0.0
    %v366 = vld [vmem:[#allocation8] sm:$0xff]
    %v367 = vld [vmem:[#allocation8 + $0x8] sm:$0xff]
    %v368 = vld [vmem:[#allocation8 + $0x10] sm:$0xff]
    %v369 = vld [vmem:[#allocation8 + $0x18] sm:$0xff]
    %v370 = vld [vmem:[#allocation8 + $0x20] sm:$0xff]
    %v371 = vld [vmem:[#allocation8 + $0x28] sm:$0xff]
    %v372 = vld [vmem:[#allocation8 + $0x30] sm:$0xff]
    %v373 = vld [vmem:[#allocation8 + $0x38] sm:$0xff]
    %v374 = vld [vmem:[#allocation8 + $0x40] sm:$0xff]
    %v375 = vld [vmem:[#allocation8 + $0x48] sm:$0xff]
    %v376 = vld [vmem:[#allocation8 + $0x50] sm:$0xff]
    %v377 = vld [vmem:[#allocation8 + $0x58] sm:$0xff]
    %v378 = vld [vmem:[#allocation8 + $0x60] sm:$0xff]
    %v379 = vld [vmem:[#allocation8 + $0x68] sm:$0xff]
    %v380 = vld [vmem:[#allocation8 + $0x70] sm:$0xff]
    %v381 = vld [vmem:[#allocation8 + $0x78] sm:$0xff]
    %v382 = vld [vmem:[%s8] sm:$0x1]
    %v384 = vperm.slane %v382, 0
    %386 = vmatpush.msra.mxu0 %v381
    %387 = vmatpush.msra.mxu0 %v380
    %388 = vmatpush.msra.mxu0 %v379
    %389 = vmatpush.msra.mxu0 %v378
    %390 = vmatpush.msra.mxu0 %v377
    %391 = vmatpush.msra.mxu0 %v376
    %392 = vmatpush.msra.mxu0 %v375
    %393 = vmatpush.msra.mxu0 %v374
    %394 = vmatpush.msra.mxu0 %v373
    %395 = vmatpush.msra.mxu0 %v372
    %396 = vmatpush.msra.mxu0 %v371
    %397 = vmatpush.msra.mxu0 %v370
    %398 = vmatpush.msra.mxu0 %v369
    %399 = vmatpush.msra.mxu0 %v368
    %400 = vmatpush.msra.mxu0 %v367
    %401 = vmatpush.msra.mxu0 %v366
    %402 = vmatmul.f32.gmra.mxu0 %v362
    %v403 = vpop.f32.mrf.mxu0
    %v404 = vadd.f32 %v384, %v403
    %405 = vmatmul.f32.gmra.mxu0 %v363
    %v406 = vpop.f32.mrf.mxu0
    %v407 = vadd.f32 %v384, %v406
    %408 = vmatmul.f32.gmra.mxu0 %v364
    %v409 = vpop.f32.mrf.mxu0
    %v410 = vadd.f32 %v384, %v409
    %411 = vmatmul.f32.gmra.mxu0 %v365
    %v412 = vpop.f32.mrf.mxu0
    %v413 = vadd.f32 %v384, %v412
    %414 = vdwg.mxu0
    %v415 = vadd.f32 %v106, %v404
    %v416 = vadd.f32 %v107, %v407
    %v417 = vadd.f32 %v108, %v410
    %v418 = vadd.f32 %v109, %v413
    %419 = vst [vmem:[#allocation10] sm:$0xff] %v415
    %420 = vst [vmem:[#allocation10 + $0x8] sm:$0xff] %v416
    %421 = vst [vmem:[#allocation10 + $0x10] sm:$0xff] %v417
    %422 = vst [vmem:[#allocation10 + $0x18] sm:$0xff] %v418
    // Predicated region
    $region58: #{tpu_custom_call.1} parent=1 // pred_check
      _
    $region59: #{tpu_custom_call.1} parent=1 // pred_check_branch
      %424 = sbr.rel (0) target = $region61
    $region60: #{tpu_custom_call.1} parent=1 // pred_region
      %426 = vsyncadd [#allocation4], 0
      %s427 = sshll.u32 [#allocation10], 4
      %s428 = int_to_ptr.vmem [resolvable:$true] %s427
      %s429 = sshll.u32 %s9, 4
      %s430 = int_to_ptr.hbm [resolvable:$true] %s429
      %435 = dma.vmem_to_hbm [thread:$0]  %s428, 512, %s430, [#allocation4], 128, 128, 8
    $region61: #{tpu_custom_call.1} parent=1 // pred_fallthru
      _
    // Predicated region
    $region62: #{tpu_custom_call.1} parent=1 // pred_check
      _
    $region63: #{tpu_custom_call.1} parent=1 // pred_check_branch
      %437 = sbr.rel (0) target = $region65
    $region64: #{tpu_custom_call.1} parent=1 // pred_region
      %439 = dma.done [#allocation4], 512
    $region65: #{tpu_custom_call.1} parent=1 // pred_fallthru
      _
    %440 = vsyncpa [#allocation3], 1
    %441 = vsyncpa [#allocation6], 1
    %442 = vsyncpa [#allocation9], 1
    %443 = vsyncpa [#allocation4], 1

</llo_original>
